<compile_context>
chip_gen: v5e
topology: v5e:2x2
jax: 0.10.0
libtpu: 0.0.40
codegen_flags: <defaults>
</compile_context>

<pallas_src>
import jax
import jax.numpy as jnp
from jax.experimental import pallas as pl
from jax.experimental.pallas import tpu as pltpu


OUT_W = 128   # lane-dense packed output width: [lc_pred | spec_pred | dual_pred | pad]
_EPS = 1e-5   # matches torch.nn.LayerNorm default


# ----------------------------------------------------------------------------
# fused kernel (factory closes over static dims / freeze flag)
# ----------------------------------------------------------------------------
def _make_dualnet_kernel(feat, hidden, compute_heads):
    F2, H2 = 2 * feat, 2 * hidden

    def silu(x):
        return x * jax.nn.sigmoid(x)

    def layer_norm(x, gamma, beta):
        # single-pass: reuse (x - mu) for the variance
        mu = jnp.mean(x, axis=-1, keepdims=True)
        xc = x - mu
        var = jnp.mean(xc * xc, axis=-1, keepdims=True)
        return xc * jax.lax.rsqrt(var + _EPS) * gamma + beta

    def dual_layer_norm(x, gamma, beta):
        # LayerNorm applied independently to the left/right halves of x
        # (the two MLP heads are fused block-diagonally into one (B, 2*hidden)
        # tensor).  Masked lane reductions -> no reshape/concat required.
        half = x.shape[-1] // 2
        col = jax.lax.broadcasted_iota(jnp.int32, x.shape, 1)
        left = col < half
        inv_n = 1.0 / half
        mu_l = jnp.sum(jnp.where(left, x, 0.0), axis=-1, keepdims=True) * inv_n
        mu_r = jnp.sum(jnp.where(left, 0.0, x), axis=-1, keepdims=True) * inv_n
        xc = x - jnp.where(left, mu_l, mu_r)
        sq = xc * xc
        var_l = jnp.sum(jnp.where(left, sq, 0.0), axis=-1, keepdims=True) * inv_n
        var_r = jnp.sum(jnp.where(left, 0.0, sq), axis=-1, keepdims=True) * inv_n
        var = jnp.where(left, var_l, var_r)
        return xc * jax.lax.rsqrt(var + _EPS) * gamma + beta

    def kernel(x_ref, vec_ref, wbb_ref, w1_ref, w2_ref, wdf_ref,
               wfh_ref, wfd_ref, o_ref):
        # bf16 operands on the MXU (native rate on v5e/v6e/v7x), f32 accumulation,
        # f32 element-wise (LN / SiLU).
        x = x_ref[...]                                           # (B, 2*in_dim) bf16

        # TODO(synk): real lc/spectra backbones are injected modules with no
        # definition in the source; stand-in is Linear + SiLU, both modalities
        # fused via a block-diagonal weight -> feat_cat = [lc_feat | sp_feat].
        feat_cat = silu(
            jnp.dot(x, wbb_ref[...], preferred_element_type=jnp.float32)
            + vec_ref[0:1, 0:F2])                                # (B, 2*feat) f32
        feat_bf = feat_cat.astype(jnp.bfloat16)

        # TODO(synk): DualFormer definition not provided; stand-in is
        # Linear(concat(spectra, lc)) -> LN -> SiLU -> Linear.
        # [lc|sp] @ [wl; ws] == spectra@ws + lc@wl  (weights pre-stacked on host).
        d = (jnp.dot(feat_bf, wdf_ref[...], preferred_element_type=jnp.float32)
             + vec_ref[7:8, 0:hidden])                           # (B, hidden)
        d = silu(layer_norm(d, vec_ref[8:9, 0:hidden], vec_ref[9:10, 0:hidden]))

        # Final fused projection straight into the lane-dense (B, OUT_W) slab:
        # cols [0:ho]=lc_pred, [ho:2ho]=spec_pred, [2ho:2ho+do]=dual_pred, rest 0.
        y = (jnp.dot(d.astype(jnp.bfloat16), wfd_ref[...],
                     preferred_element_type=jnp.float32)
             + vec_ref[10:11, :])                                # (B, OUT_W)

        if compute_heads:
            # Both MLPHeads fused block-diagonally:
            # Linear -> LayerNorm -> SiLU -> Linear -> LayerNorm -> SiLU -> Linear
            h = (jnp.dot(feat_bf, w1_ref[...], preferred_element_type=jnp.float32)
                 + vec_ref[1:2, 0:H2])
            h = silu(dual_layer_norm(h, vec_ref[2:3, 0:H2], vec_ref[3:4, 0:H2]))
            h = (jnp.dot(h.astype(jnp.bfloat16), w2_ref[...],
                         preferred_element_type=jnp.float32)
                 + vec_ref[4:5, 0:H2])
            h = silu(dual_layer_norm(h, vec_ref[5:6, 0:H2], vec_ref[6:7, 0:H2]))
            y = y + jnp.dot(h.astype(jnp.bfloat16), wfh_ref[...],
                            preferred_element_type=jnp.float32)

        o_ref[...] = y.astype(o_ref.dtype)

    return kernel


# ----------------------------------------------------------------------------
# DualNet forward — single fused pallas_call
# ----------------------------------------------------------------------------
def dual_net_forward(lc, spectra, params, latent=None, freeze_backbone=False):
    # TODO(synk): `latent` (w_dim) is unused — DualFormer has no definition in the
    # source; the dual branch is a deterministic dense stand-in.
    feat, hidden, head_out, dual_out, out_w = params["dims"]
    B = lc.shape[0]
    x_cat = jnp.concatenate([lc, spectra], axis=-1).astype(jnp.bfloat16)
    in2 = x_cat.shape[1]

    compute_heads = not freeze_backbone
    kernel = _make_dualnet_kernel(feat, hidden, compute_heads)

    F2, H2 = 2 * feat, 2 * hidden
    mm = in2 * F2 + F2 * hidden + hidden * out_w
    if compute_heads:
        mm += F2 * H2 + H2 * H2 + H2 * out_w
    flops = int(2 * B * mm)
    transcendentals = int(B * (F2 + hidden + 2 + (2 * H2 + 4 if compute_heads else 0)))

    operands = (x_cat, params["vec"], params["w_bb"], params["w1"], params["w2"],
                params["w_df"], params["wf_heads"], params["wf_df"])
    bytes_accessed = int(sum(int(a.size) * a.dtype.itemsize for a in operands)
                         + B * out_w * 4)

    # TODO(synk): for large batch, add a batch grid (activation BlockSpec
    # ((TB, D), lambda i: (i, 0)), constant index_map for the weights so they stay
    # VMEM-resident, dimension_semantics=("parallel",) for megacore).  At B=2 a
    # single grid-less call with everything in VMEM is optimal.
    out = pl.pallas_call(
        kernel,
        out_shape=jax.ShapeDtypeStruct((B, out_w), jnp.float32),
        in_specs=[pl.BlockSpec(memory_space=pltpu.MemorySpace.VMEM)] * len(operands),
        out_specs=pl.BlockSpec(memory_space=pltpu.MemorySpace.VMEM),
        cost_estimate=pl.CostEstimate(flops=flops,
                                      transcendentals=transcendentals,
                                      bytes_accessed=bytes_accessed),
    )(*operands)

    dual_pred = out[:, 2 * head_out:2 * head_out + dual_out]
    if freeze_backbone:
        return {"dual_pred": dual_pred, "lc_pred": None, "spec_pred": None}
    return {"dual_pred": dual_pred,
            "lc_pred": out[:, :head_out],
            "spec_pred": out[:, head_out:2 * head_out]}


# ----------------------------------------------------------------------------
# parameter init (PyTorch-style uniform fan-in bounds) + packing
# ----------------------------------------------------------------------------
def _init_linear(key, fan_in, fan_out):
    kw, kb = jax.random.split(key)
    bound = 1.0 / (fan_in ** 0.5)
    w = jax.random.uniform(kw, (fan_in, fan_out), jnp.float32, -bound, bound)
    b = jax.random.uniform(kb, (fan_out,), jnp.float32, -bound, bound)
    return w, b


def _init_mlp_head(key, in_dim, hidden_dim, out_dim, w_dim=0):
    in_dim += w_dim
    k1, k2, k3 = jax.random.split(key, 3)
    w1, b1 = _init_linear(k1, in_dim, hidden_dim)
    w2, b2 = _init_linear(k2, hidden_dim, hidden_dim)
    w3, b3 = _init_linear(k3, hidden_dim, out_dim)
    ones = jnp.ones((hidden_dim,), jnp.float32)
    zeros = jnp.zeros((hidden_dim,), jnp.float32)
    return (w1, b1, ones, zeros, w2, b2, ones, zeros, w3, b3)


def _init_dual_former(key, feat_dim, hidden_dim, out_dim):
    k1, k2, k3 = jax.random.split(key, 3)
    ws, b = _init_linear(k1, feat_dim, hidden_dim)
    wl, _ = _init_linear(k2, feat_dim, hidden_dim)
    wo, bo = _init_linear(k3, hidden_dim, out_dim)
    return (ws, wl, b,
            jnp.ones((hidden_dim,), jnp.float32),
            jnp.zeros((hidden_dim,), jnp.float32),
            wo, bo)


def _block_diag(a, b):
    out = jnp.zeros((a.shape[0] + b.shape[0], a.shape[1] + b.shape[1]), jnp.float32)
    out = out.at[:a.shape[0], :a.shape[1]].set(a)
    out = out.at[a.shape[0]:, a.shape[1]:].set(b)
    return out


def pack_dual_net_params(raw, out_w=OUT_W):
    """Pack per-module params into fused bf16 weights + one f32 vector slab."""
    w_lc, b_lc = raw["lc_backbone"]
    w_sp, b_sp = raw["spectra_backbone"]
    (w1l, b1l, g1l, be1l, w2l, b2l, g2l, be2l, w3l, b3l) = raw["lc_head"]
    (w1s, b1s, g1s, be1s, w2s, b2s, g2s, be2s, w3s, b3s) = raw["spectra_head"]
    (ws, wl, bd, gd, bed, wo, bo) = raw["dual_former"]

    feat = w_lc.shape[1]
    hidden = w1l.shape[1]
    head_out = w3l.shape[1]
    dual_out = wo.shape[1]
    assert 2 * head_out + dual_out <= out_w

    w_bb = _block_diag(w_lc, w_sp)                  # (2*in, 2*feat)
    w1 = _block_diag(w1l, w1s)                      # (2*feat, 2*hidden)
    w2 = _block_diag(w2l, w2s)                      # (2*hidden, 2*hidden)
    w_df = jnp.concatenate([wl, ws], axis=0)        # [lc|sp] @ [wl; ws] == s@ws + l@wl

    # final fused, lane-dense projection into the (B, out_w) output slab
    wf_heads = jnp.zeros((2 * hidden, out_w), jnp.float32)
    wf_heads = wf_heads.at[:hidden, :head_out].set(w3l)
    wf_heads = wf_heads.at[hidden:, head_out:2 * head_out].set(w3s)
    wf_df = jnp.zeros((hidden, out_w), jnp.float32)
    wf_df = wf_df.at[:, 2 * head_out:2 * head_out + dual_out].set(wo)

    def row(v):
        return jnp.zeros((out_w,), jnp.float32).at[:v.shape[0]].set(v)

    b_fin = jnp.zeros((out_w,), jnp.float32)
    b_fin = b_fin.at[:head_out].set(b3l)
    b_fin = b_fin.at[head_out:2 * head_out].set(b3s)
    b_fin = b_fin.at[2 * head_out:2 * head_out + dual_out].set(bo)

    vec = jnp.stack(
        [row(jnp.concatenate([b_lc, b_sp])),        # 0: backbone bias
         row(jnp.concatenate([b1l, b1s])),          # 1: head L1 bias
         row(jnp.concatenate([g1l, g1s])),          # 2: head LN1 gamma
         row(jnp.concatenate([be1l, be1s])),        # 3: head LN1 beta
         row(jnp.concatenate([b2l, b2s])),          # 4: head L2 bias
         row(jnp.concatenate([g2l, g2s])),          # 5: head LN2 gamma
         row(jnp.concatenate([be2l, be2s])),        # 6: head LN2 beta
         row(bd),                                   # 7: dual_former bias
         row(gd),                                   # 8: dual_former LN gamma
         row(bed),                                  # 9: dual_former LN beta
         b_fin,                                     # 10: fused final bias
         ] + [jnp.zeros((out_w,), jnp.float32)] * 5)  # pad rows -> (16, out_w)

    bf16 = lambda a: a.astype(jnp.bfloat16)
    return {
        "vec": vec,
        "w_bb": bf16(w_bb), "w1": bf16(w1), "w2": bf16(w2),
        "w_df": bf16(w_df), "wf_heads": bf16(wf_heads), "wf_df": bf16(wf_df),
        "dims": (feat, hidden, head_out, dual_out, out_w),
    }


# ----------------------------------------------------------------------------
# pure-JAX f32 reference (mirrors the PyTorch module semantics / stand-ins)
# ----------------------------------------------------------------------------
def reference_forward(lc, spectra, raw, latent=None, freeze_backbone=False):
    def silu(x):
        return x * jax.nn.sigmoid(x)

    def ln(x, g, b):
        mu = jnp.mean(x, axis=-1, keepdims=True)
        xc = x - mu
        var = jnp.mean(xc * xc, axis=-1, keepdims=True)
        return xc * jax.lax.rsqrt(var + _EPS) * g + b

    def backbone(x, w, b):
        return silu(x @ w + b)

    def head(x, p):
        w1, b1, g1, be1, w2, b2, g2, be2, w3, b3 = p
        h = silu(ln(x @ w1 + b1, g1, be1))
        h = silu(ln(h @ w2 + b2, g2, be2))
        return h @ w3 + b3

    def dual_former(s, l, p):
        ws, wl, b, g, be, wo, bo = p
        h = silu(ln(s @ ws + l @ wl + b, g, be))
        return h @ wo + bo

    lc_feat = backbone(lc, *raw["lc_backbone"])
    sp_feat = backbone(spectra, *raw["spectra_backbone"])
    lc_pred = None if freeze_backbone else head(lc_feat, raw["lc_head"])
    sp_pred = None if freeze_backbone else head(sp_feat, raw["spectra_head"])
    dual_pred = dual_former(sp_feat, lc_feat, raw["dual_former"])
    return {"dual_pred": dual_pred, "lc_pred": lc_pred, "spec_pred": sp_pred}


if __name__ == "__main__":
    BATCH = 2
    LC_IN = 16        # light-curve input features
    SPEC_IN = 16      # spectra input features
    FEAT = 32         # backbone feature dim (MLPHead in_dim)
    HIDDEN = 32       # MLPHead / dual_former hidden dim
    HEAD_OUT = 4      # regression targets per head
    DUAL_OUT = 6      # dual_former output dim

    root = jax.random.PRNGKey(0)
    k_lc_bb, k_sp_bb, k_lc_h, k_sp_h, k_df, k_x1, k_x2 = jax.random.split(root, 7)

    raw_params = {
        "lc_backbone": _init_linear(k_lc_bb, LC_IN, FEAT),
        "spectra_backbone": _init_linear(k_sp_bb, SPEC_IN, FEAT),
        "lc_head": _init_mlp_head(k_lc_h, FEAT, HIDDEN, HEAD_OUT),
        "spectra_head": _init_mlp_head(k_sp_h, FEAT, HIDDEN, HEAD_OUT),
        "dual_former": _init_dual_former(k_df, FEAT, HIDDEN, DUAL_OUT),
    }
    params = pack_dual_net_params(raw_params)

    lc = jax.random.normal(k_x1, (BATCH, LC_IN), jnp.float32)
    spectra = jax.random.normal(k_x2, (BATCH, SPEC_IN), jnp.float32)

    out = dual_net_forward(lc, spectra, params, latent=None, freeze_backbone=False)
    jax.block_until_ready(out["dual_pred"])
    jax.block_until_ready(out["lc_pred"])
    jax.block_until_ready(out["spec_pred"])

    assert out["dual_pred"].shape == (BATCH, DUAL_OUT)
    assert out["lc_pred"].shape == (BATCH, HEAD_OUT)
    assert out["spec_pred"].shape == (BATCH, HEAD_OUT)

    # parity vs pure-f32 reference (kernel uses bf16 MXU operands -> loose tol)
    ref = reference_forward(lc, spectra, raw_params)
    for name in ("dual_pred", "lc_pred", "spec_pred"):
        assert bool(jnp.allclose(out[name], ref[name], atol=5e-2, rtol=5e-2)), name

    print("KERNEL_OK")
</pallas_src>

<mosaic_0001>
module attributes {stable_mosaic.version = 11 : i64} {
  func.func @kernel(%arg0: memref<2x32xbf16, #tpu.memory_space<vmem>>, %arg1: memref<16x128xf32, #tpu.memory_space<vmem>>, %arg2: memref<32x64xbf16, #tpu.memory_space<vmem>>, %arg3: memref<64x64xbf16, #tpu.memory_space<vmem>>, %arg4: memref<64x64xbf16, #tpu.memory_space<vmem>>, %arg5: memref<64x32xbf16, #tpu.memory_space<vmem>>, %arg6: memref<64x128xbf16, #tpu.memory_space<vmem>>, %arg7: memref<32x128xbf16, #tpu.memory_space<vmem>>, %arg8: memref<2x128xf32, #tpu.memory_space<vmem>>) attributes {dimension_semantics = [], scalar_prefetch = 0 : i64, scratch_operands = 0 : i64, tpu.core_type = #tpu.core_type<tc>} {
    %c0 = arith.constant 0 : index
    %c0_0 = arith.constant 0 : index
    %0 = vector.load %arg0[%c0, %c0_0] : memref<2x32xbf16, #tpu.memory_space<vmem>>, vector<2x32xbf16>
    %c0_1 = arith.constant 0 : index
    %c0_2 = arith.constant 0 : index
    %1 = vector.load %arg2[%c0_1, %c0_2] : memref<32x64xbf16, #tpu.memory_space<vmem>>, vector<32x64xbf16>
    %cst = arith.constant dense<0.000000e+00> : vector<2x64xf32>
    %2 = tpu.matmul %0, %1, %cst {dimension_numbers = #tpu.dot_dimension_numbers<[1], [0], [0], [1], [0, 0, 1, 1], [], []>} : vector<2x32xbf16>, vector<32x64xbf16>, vector<2x64xf32> -> vector<2x64xf32>
    %c0_3 = arith.constant 0 : index
    %c0_4 = arith.constant 0 : index
    %3 = vector.load %arg1[%c0_3, %c0_4] : memref<16x128xf32, #tpu.memory_space<vmem>>, vector<1x64xf32>
    %4 = vector.broadcast %3 : vector<1x64xf32> to vector<2x64xf32>
    %5 = arith.addf %2, %4 : vector<2x64xf32>
    %6 = arith.negf %5 : vector<2x64xf32>
    %7 = math.exp %6 : vector<2x64xf32>
    %cst_5 = arith.constant 1.000000e+00 : f32
    %8 = vector.broadcast %cst_5 : f32 to vector<2x64xf32>
    %9 = arith.addf %8, %7 : vector<2x64xf32>
    %10 = arith.divf %8, %9 : vector<2x64xf32>
    %11 = arith.mulf %5, %10 : vector<2x64xf32>
    %12 = arith.truncf %11 : vector<2x64xf32> to vector<2x64xbf16>
    %c0_6 = arith.constant 0 : index
    %c0_7 = arith.constant 0 : index
    %13 = vector.load %arg5[%c0_6, %c0_7] : memref<64x32xbf16, #tpu.memory_space<vmem>>, vector<64x32xbf16>
    %cst_8 = arith.constant dense<0.000000e+00> : vector<2x32xf32>
    %14 = tpu.matmul %12, %13, %cst_8 {dimension_numbers = #tpu.dot_dimension_numbers<[1], [0], [0], [1], [0, 0, 1, 1], [], []>} : vector<2x64xbf16>, vector<64x32xbf16>, vector<2x32xf32> -> vector<2x32xf32>
    %c7 = arith.constant 7 : index
    %c0_9 = arith.constant 0 : index
    %15 = vector.load %arg1[%c7, %c0_9] : memref<16x128xf32, #tpu.memory_space<vmem>>, vector<1x32xf32>
    %16 = vector.broadcast %15 : vector<1x32xf32> to vector<2x32xf32>
    %17 = arith.addf %14, %16 : vector<2x32xf32>
    %c8 = arith.constant 8 : index
    %c0_10 = arith.constant 0 : index
    %18 = vector.load %arg1[%c8, %c0_10] : memref<16x128xf32, #tpu.memory_space<vmem>>, vector<1x32xf32>
    %c9 = arith.constant 9 : index
    %c0_11 = arith.constant 0 : index
    %19 = vector.load %arg1[%c9, %c0_11] : memref<16x128xf32, #tpu.memory_space<vmem>>, vector<1x32xf32>
    %cst_12 = arith.constant dense<0.000000e+00> : vector<2xf32>
    %20 = vector.multi_reduction <add>, %17, %cst_12 [1] : vector<2x32xf32> to vector<2xf32>
    %21 = vector.shape_cast %20 : vector<2xf32> to vector<2x1xf32>
    %cst_13 = arith.constant 3.200000e+01 : f32
    %22 = vector.broadcast %cst_13 : f32 to vector<2x1xf32>
    %23 = arith.divf %21, %22 : vector<2x1xf32>
    %24 = vector.broadcast %23 : vector<2x1xf32> to vector<2x32xf32>
    %25 = arith.subf %17, %24 : vector<2x32xf32>
    %26 = arith.mulf %25, %25 : vector<2x32xf32>
    %cst_14 = arith.constant dense<0.000000e+00> : vector<2xf32>
    %27 = vector.multi_reduction <add>, %26, %cst_14 [1] : vector<2x32xf32> to vector<2xf32>
    %28 = vector.shape_cast %27 : vector<2xf32> to vector<2x1xf32>
    %cst_15 = arith.constant 3.200000e+01 : f32
    %29 = vector.broadcast %cst_15 : f32 to vector<2x1xf32>
    %30 = arith.divf %28, %29 : vector<2x1xf32>
    %cst_16 = arith.constant 9.99999974E-6 : f32
    %31 = vector.broadcast %cst_16 : f32 to vector<2x1xf32>
    %32 = arith.addf %30, %31 : vector<2x1xf32>
    %33 = math.rsqrt %32 : vector<2x1xf32>
    %34 = vector.broadcast %33 : vector<2x1xf32> to vector<2x32xf32>
    %35 = arith.mulf %25, %34 : vector<2x32xf32>
    %36 = vector.broadcast %18 : vector<1x32xf32> to vector<2x32xf32>
    %37 = arith.mulf %35, %36 : vector<2x32xf32>
    %38 = vector.broadcast %19 : vector<1x32xf32> to vector<2x32xf32>
    %39 = arith.addf %37, %38 : vector<2x32xf32>
    %40 = arith.negf %39 : vector<2x32xf32>
    %41 = math.exp %40 : vector<2x32xf32>
    %cst_17 = arith.constant 1.000000e+00 : f32
    %42 = vector.broadcast %cst_17 : f32 to vector<2x32xf32>
    %43 = arith.addf %42, %41 : vector<2x32xf32>
    %44 = arith.divf %42, %43 : vector<2x32xf32>
    %45 = arith.mulf %39, %44 : vector<2x32xf32>
    %46 = arith.truncf %45 : vector<2x32xf32> to vector<2x32xbf16>
    %c0_18 = arith.constant 0 : index
    %c0_19 = arith.constant 0 : index
    %47 = vector.load %arg7[%c0_18, %c0_19] : memref<32x128xbf16, #tpu.memory_space<vmem>>, vector<32x128xbf16>
    %cst_20 = arith.constant dense<0.000000e+00> : vector<2x128xf32>
    %48 = tpu.matmul %46, %47, %cst_20 {dimension_numbers = #tpu.dot_dimension_numbers<[1], [0], [0], [1], [0, 0, 1, 1], [], []>} : vector<2x32xbf16>, vector<32x128xbf16>, vector<2x128xf32> -> vector<2x128xf32>
    %c10 = arith.constant 10 : index
    %c0_21 = arith.constant 0 : index
    %49 = vector.load %arg1[%c10, %c0_21] : memref<16x128xf32, #tpu.memory_space<vmem>>, vector<1x128xf32>
    %50 = vector.broadcast %49 : vector<1x128xf32> to vector<2x128xf32>
    %51 = arith.addf %48, %50 : vector<2x128xf32>
    %c0_22 = arith.constant 0 : index
    %c0_23 = arith.constant 0 : index
    %52 = vector.load %arg3[%c0_22, %c0_23] : memref<64x64xbf16, #tpu.memory_space<vmem>>, vector<64x64xbf16>
    %cst_24 = arith.constant dense<0.000000e+00> : vector<2x64xf32>
    %53 = tpu.matmul %12, %52, %cst_24 {dimension_numbers = #tpu.dot_dimension_numbers<[1], [0], [0], [1], [0, 0, 1, 1], [], []>} : vector<2x64xbf16>, vector<64x64xbf16>, vector<2x64xf32> -> vector<2x64xf32>
    %c1 = arith.constant 1 : index
    %c0_25 = arith.constant 0 : index
    %54 = vector.load %arg1[%c1, %c0_25] : memref<16x128xf32, #tpu.memory_space<vmem>>, vector<1x64xf32>
    %55 = vector.broadcast %54 : vector<1x64xf32> to vector<2x64xf32>
    %56 = arith.addf %53, %55 : vector<2x64xf32>
    %c2 = arith.constant 2 : index
    %c0_26 = arith.constant 0 : index
    %57 = vector.load %arg1[%c2, %c0_26] : memref<16x128xf32, #tpu.memory_space<vmem>>, vector<1x64xf32>
    %c3 = arith.constant 3 : index
    %c0_27 = arith.constant 0 : index
    %58 = vector.load %arg1[%c3, %c0_27] : memref<16x128xf32, #tpu.memory_space<vmem>>, vector<1x64xf32>
    %59 = tpu.iota {dimensions = array<i32: 1>} : vector<2x64xi32>
    %c32_i32 = arith.constant 32 : i32
    %60 = vector.broadcast %c32_i32 : i32 to vector<2x64xi32>
    %61 = arith.cmpi slt, %59, %60 : vector<2x64xi32>
    %cst_28 = arith.constant 0.000000e+00 : f32
    %62 = vector.broadcast %cst_28 : f32 to vector<2x64xf32>
    %63 = arith.select %61, %56, %62 : vector<2x64xi1>, vector<2x64xf32>
    %cst_29 = arith.constant dense<0.000000e+00> : vector<2xf32>
    %64 = vector.multi_reduction <add>, %63, %cst_29 [1] : vector<2x64xf32> to vector<2xf32>
    %65 = vector.shape_cast %64 : vector<2xf32> to vector<2x1xf32>
    %cst_30 = arith.constant 3.125000e-02 : f32
    %66 = vector.broadcast %cst_30 : f32 to vector<2x1xf32>
    %67 = arith.mulf %65, %66 : vector<2x1xf32>
    %cst_31 = arith.constant 0.000000e+00 : f32
    %68 = vector.broadcast %cst_31 : f32 to vector<2x64xf32>
    %69 = arith.select %61, %68, %56 : vector<2x64xi1>, vector<2x64xf32>
    %cst_32 = arith.constant dense<0.000000e+00> : vector<2xf32>
    %70 = vector.multi_reduction <add>, %69, %cst_32 [1] : vector<2x64xf32> to vector<2xf32>
    %71 = vector.shape_cast %70 : vector<2xf32> to vector<2x1xf32>
    %cst_33 = arith.constant 3.125000e-02 : f32
    %72 = vector.broadcast %cst_33 : f32 to vector<2x1xf32>
    %73 = arith.mulf %71, %72 : vector<2x1xf32>
    %74 = vector.shape_cast %67 : vector<2x1xf32> to vector<2x1xf32>
    %75 = vector.broadcast %74 : vector<2x1xf32> to vector<2x64xf32>
    %76 = vector.shape_cast %73 : vector<2x1xf32> to vector<2x1xf32>
    %77 = vector.broadcast %76 : vector<2x1xf32> to vector<2x64xf32>
    %78 = arith.select %61, %75, %77 : vector<2x64xi1>, vector<2x64xf32>
    %79 = arith.subf %56, %78 : vector<2x64xf32>
    %80 = arith.mulf %79, %79 : vector<2x64xf32>
    %cst_34 = arith.constant 0.000000e+00 : f32
    %81 = vector.broadcast %cst_34 : f32 to vector<2x64xf32>
    %82 = arith.select %61, %80, %81 : vector<2x64xi1>, vector<2x64xf32>
    %cst_35 = arith.constant dense<0.000000e+00> : vector<2xf32>
    %83 = vector.multi_reduction <add>, %82, %cst_35 [1] : vector<2x64xf32> to vector<2xf32>
    %84 = vector.shape_cast %83 : vector<2xf32> to vector<2x1xf32>
    %cst_36 = arith.constant 3.125000e-02 : f32
    %85 = vector.broadcast %cst_36 : f32 to vector<2x1xf32>
    %86 = arith.mulf %84, %85 : vector<2x1xf32>
    %cst_37 = arith.constant 0.000000e+00 : f32
    %87 = vector.broadcast %cst_37 : f32 to vector<2x64xf32>
    %88 = arith.select %61, %87, %80 : vector<2x64xi1>, vector<2x64xf32>
    %cst_38 = arith.constant dense<0.000000e+00> : vector<2xf32>
    %89 = vector.multi_reduction <add>, %88, %cst_38 [1] : vector<2x64xf32> to vector<2xf32>
    %90 = vector.shape_cast %89 : vector<2xf32> to vector<2x1xf32>
    %cst_39 = arith.constant 3.125000e-02 : f32
    %91 = vector.broadcast %cst_39 : f32 to vector<2x1xf32>
    %92 = arith.mulf %90, %91 : vector<2x1xf32>
    %93 = vector.shape_cast %86 : vector<2x1xf32> to vector<2x1xf32>
    %94 = vector.broadcast %93 : vector<2x1xf32> to vector<2x64xf32>
    %95 = vector.shape_cast %92 : vector<2x1xf32> to vector<2x1xf32>
    %96 = vector.broadcast %95 : vector<2x1xf32> to vector<2x64xf32>
    %97 = arith.select %61, %94, %96 : vector<2x64xi1>, vector<2x64xf32>
    %cst_40 = arith.constant 9.99999974E-6 : f32
    %98 = vector.broadcast %cst_40 : f32 to vector<2x64xf32>
    %99 = arith.addf %97, %98 : vector<2x64xf32>
    %100 = math.rsqrt %99 : vector<2x64xf32>
    %101 = arith.mulf %79, %100 : vector<2x64xf32>
    %102 = vector.broadcast %57 : vector<1x64xf32> to vector<2x64xf32>
    %103 = arith.mulf %101, %102 : vector<2x64xf32>
    %104 = vector.broadcast %58 : vector<1x64xf32> to vector<2x64xf32>
    %105 = arith.addf %103, %104 : vector<2x64xf32>
    %106 = arith.negf %105 : vector<2x64xf32>
    %107 = math.exp %106 : vector<2x64xf32>
    %cst_41 = arith.constant 1.000000e+00 : f32
    %108 = vector.broadcast %cst_41 : f32 to vector<2x64xf32>
    %109 = arith.addf %108, %107 : vector<2x64xf32>
    %110 = arith.divf %108, %109 : vector<2x64xf32>
    %111 = arith.mulf %105, %110 : vector<2x64xf32>
    %112 = arith.truncf %111 : vector<2x64xf32> to vector<2x64xbf16>
    %c0_42 = arith.constant 0 : index
    %c0_43 = arith.constant 0 : index
    %113 = vector.load %arg4[%c0_42, %c0_43] : memref<64x64xbf16, #tpu.memory_space<vmem>>, vector<64x64xbf16>
    %cst_44 = arith.constant dense<0.000000e+00> : vector<2x64xf32>
    %114 = tpu.matmul %112, %113, %cst_44 {dimension_numbers = #tpu.dot_dimension_numbers<[1], [0], [0], [1], [0, 0, 1, 1], [], []>} : vector<2x64xbf16>, vector<64x64xbf16>, vector<2x64xf32> -> vector<2x64xf32>
    %c4 = arith.constant 4 : index
    %c0_45 = arith.constant 0 : index
    %115 = vector.load %arg1[%c4, %c0_45] : memref<16x128xf32, #tpu.memory_space<vmem>>, vector<1x64xf32>
    %116 = vector.broadcast %115 : vector<1x64xf32> to vector<2x64xf32>
    %117 = arith.addf %114, %116 : vector<2x64xf32>
    %c5 = arith.constant 5 : index
    %c0_46 = arith.constant 0 : index
    %118 = vector.load %arg1[%c5, %c0_46] : memref<16x128xf32, #tpu.memory_space<vmem>>, vector<1x64xf32>
    %c6 = arith.constant 6 : index
    %c0_47 = arith.constant 0 : index
    %119 = vector.load %arg1[%c6, %c0_47] : memref<16x128xf32, #tpu.memory_space<vmem>>, vector<1x64xf32>
    %120 = tpu.iota {dimensions = array<i32: 1>} : vector<2x64xi32>
    %c32_i32_48 = arith.constant 32 : i32
    %121 = vector.broadcast %c32_i32_48 : i32 to vector<2x64xi32>
    %122 = arith.cmpi slt, %120, %121 : vector<2x64xi32>
    %cst_49 = arith.constant 0.000000e+00 : f32
    %123 = vector.broadcast %cst_49 : f32 to vector<2x64xf32>
    %124 = arith.select %122, %117, %123 : vector<2x64xi1>, vector<2x64xf32>
    %cst_50 = arith.constant dense<0.000000e+00> : vector<2xf32>
    %125 = vector.multi_reduction <add>, %124, %cst_50 [1] : vector<2x64xf32> to vector<2xf32>
    %126 = vector.shape_cast %125 : vector<2xf32> to vector<2x1xf32>
    %cst_51 = arith.constant 3.125000e-02 : f32
    %127 = vector.broadcast %cst_51 : f32 to vector<2x1xf32>
    %128 = arith.mulf %126, %127 : vector<2x1xf32>
    %cst_52 = arith.constant 0.000000e+00 : f32
    %129 = vector.broadcast %cst_52 : f32 to vector<2x64xf32>
    %130 = arith.select %122, %129, %117 : vector<2x64xi1>, vector<2x64xf32>
    %cst_53 = arith.constant dense<0.000000e+00> : vector<2xf32>
    %131 = vector.multi_reduction <add>, %130, %cst_53 [1] : vector<2x64xf32> to vector<2xf32>
    %132 = vector.shape_cast %131 : vector<2xf32> to vector<2x1xf32>
    %cst_54 = arith.constant 3.125000e-02 : f32
    %133 = vector.broadcast %cst_54 : f32 to vector<2x1xf32>
    %134 = arith.mulf %132, %133 : vector<2x1xf32>
    %135 = vector.shape_cast %128 : vector<2x1xf32> to vector<2x1xf32>
    %136 = vector.broadcast %135 : vector<2x1xf32> to vector<2x64xf32>
    %137 = vector.shape_cast %134 : vector<2x1xf32> to vector<2x1xf32>
    %138 = vector.broadcast %137 : vector<2x1xf32> to vector<2x64xf32>
    %139 = arith.select %122, %136, %138 : vector<2x64xi1>, vector<2x64xf32>
    %140 = arith.subf %117, %139 : vector<2x64xf32>
    %141 = arith.mulf %140, %140 : vector<2x64xf32>
    %cst_55 = arith.constant 0.000000e+00 : f32
    %142 = vector.broadcast %cst_55 : f32 to vector<2x64xf32>
    %143 = arith.select %122, %141, %142 : vector<2x64xi1>, vector<2x64xf32>
    %cst_56 = arith.constant dense<0.000000e+00> : vector<2xf32>
    %144 = vector.multi_reduction <add>, %143, %cst_56 [1] : vector<2x64xf32> to vector<2xf32>
    %145 = vector.shape_cast %144 : vector<2xf32> to vector<2x1xf32>
    %cst_57 = arith.constant 3.125000e-02 : f32
    %146 = vector.broadcast %cst_57 : f32 to vector<2x1xf32>
    %147 = arith.mulf %145, %146 : vector<2x1xf32>
    %cst_58 = arith.constant 0.000000e+00 : f32
    %148 = vector.broadcast %cst_58 : f32 to vector<2x64xf32>
    %149 = arith.select %122, %148, %141 : vector<2x64xi1>, vector<2x64xf32>
    %cst_59 = arith.constant dense<0.000000e+00> : vector<2xf32>
    %150 = vector.multi_reduction <add>, %149, %cst_59 [1] : vector<2x64xf32> to vector<2xf32>
    %151 = vector.shape_cast %150 : vector<2xf32> to vector<2x1xf32>
    %cst_60 = arith.constant 3.125000e-02 : f32
    %152 = vector.broadcast %cst_60 : f32 to vector<2x1xf32>
    %153 = arith.mulf %151, %152 : vector<2x1xf32>
    %154 = vector.shape_cast %147 : vector<2x1xf32> to vector<2x1xf32>
    %155 = vector.broadcast %154 : vector<2x1xf32> to vector<2x64xf32>
    %156 = vector.shape_cast %153 : vector<2x1xf32> to vector<2x1xf32>
    %157 = vector.broadcast %156 : vector<2x1xf32> to vector<2x64xf32>
    %158 = arith.select %122, %155, %157 : vector<2x64xi1>, vector<2x64xf32>
    %cst_61 = arith.constant 9.99999974E-6 : f32
    %159 = vector.broadcast %cst_61 : f32 to vector<2x64xf32>
    %160 = arith.addf %158, %159 : vector<2x64xf32>
    %161 = math.rsqrt %160 : vector<2x64xf32>
    %162 = arith.mulf %140, %161 : vector<2x64xf32>
    %163 = vector.broadcast %118 : vector<1x64xf32> to vector<2x64xf32>
    %164 = arith.mulf %162, %163 : vector<2x64xf32>
    %165 = vector.broadcast %119 : vector<1x64xf32> to vector<2x64xf32>
    %166 = arith.addf %164, %165 : vector<2x64xf32>
    %167 = arith.negf %166 : vector<2x64xf32>
    %168 = math.exp %167 : vector<2x64xf32>
    %cst_62 = arith.constant 1.000000e+00 : f32
    %169 = vector.broadcast %cst_62 : f32 to vector<2x64xf32>
    %170 = arith.addf %169, %168 : vector<2x64xf32>
    %171 = arith.divf %169, %170 : vector<2x64xf32>
    %172 = arith.mulf %166, %171 : vector<2x64xf32>
    %173 = arith.truncf %172 : vector<2x64xf32> to vector<2x64xbf16>
    %c0_63 = arith.constant 0 : index
    %c0_64 = arith.constant 0 : index
    %174 = vector.load %arg6[%c0_63, %c0_64] : memref<64x128xbf16, #tpu.memory_space<vmem>>, vector<64x128xbf16>
    %cst_65 = arith.constant dense<0.000000e+00> : vector<2x128xf32>
    %175 = tpu.matmul %173, %174, %cst_65 {dimension_numbers = #tpu.dot_dimension_numbers<[1], [0], [0], [1], [0, 0, 1, 1], [], []>} : vector<2x64xbf16>, vector<64x128xbf16>, vector<2x128xf32> -> vector<2x128xf32>
    %176 = arith.addf %51, %175 : vector<2x128xf32>
    %c0_66 = arith.constant 0 : index
    %c0_67 = arith.constant 0 : index
    %177 = vector.load %arg8[%c0_66, %c0_67] : memref<2x128xf32, #tpu.memory_space<vmem>>, vector<2x128xf32>
    tpu.vector_store %arg8[%c0_66, %c0_67], %176 {strides = array<i32>} : memref<2x128xf32, #tpu.memory_space<vmem>>, vector<2x128xf32>,
    return
  }
}

</mosaic_0001>

<llo_original>
// kernel: tpu_custom_call.1
$region0: #{tpu_custom_call.1}
  #allocation0 [shape = 'u32[]', space=smem, size = 0x4, offset = 0x4, fixed_abs, tag = 'smem constant byte address 0x4 - core index']
  #allocation1 [shape = 'u32[72,128]{1,0:T(1,128)}', space=vmem, size = 0x9000, scoped, tag = 'internal scratch']
  %s0 = inlined_call_operand.vmem [shape: bf16[2,32], index: 0, kind: input, shape index: {}]
  %s1 = inlined_call_operand.vmem [shape: f32[16,128], index: 1, kind: input, shape index: {}]
  %s2 = inlined_call_operand.hbm [shape: bf16[32,64], index: 2, kind: input, shape index: {}]
  %s3 = inlined_call_operand.vmem [shape: bf16[64,64], index: 3, kind: input, shape index: {}]
  %s4 = inlined_call_operand.hbm [shape: bf16[64,64], index: 4, kind: input, shape index: {}]
  %s5 = inlined_call_operand.vmem [shape: bf16[64,32], index: 5, kind: input, shape index: {}]
  %s6 = inlined_call_operand.hbm [shape: bf16[64,128], index: 6, kind: input, shape index: {}]
  %s7 = inlined_call_operand.hbm [shape: bf16[32,128], index: 7, kind: input, shape index: {}]
  %s8 = inlined_call_operand.hbm [shape: f32[2,128], index: 8, kind: output, shape index: {}]
  %s9 = sld [smem:[#allocation0]]
  $region58: #{tpu_custom_call.1} parent=0
    _
  %s11 = ssub.s32 1, %s9
  %s12 = scalar_select 0, %s11, %s9
  $region1: #{tpu_custom_call.1} parent=0
    #allocation2 [shape = 'u8[8192]{0}', space=vmem, size = 0x2000, scoped, tag = 'input window, operand 2, single buffered']
    #allocation3 [shape = 's32[1]{0}', space=sflag, size = 0x4, scoped, tag = 'scoped memory for tpu_custom_call.1']
    #allocation4 [shape = 's32[1]{0}', space=sflag, size = 0x4, scoped, tag = 'scoped memory for tpu_custom_call.1']
    #allocation5 [shape = 'u8[16384]{0}', space=vmem, size = 0x4000, scoped, tag = 'input window, operand 4, single buffered']
    #allocation6 [shape = 's32[1]{0}', space=sflag, size = 0x4, scoped, tag = 'scoped memory for tpu_custom_call.1']
    #allocation7 [shape = 'u8[16384]{0}', space=vmem, size = 0x4000, scoped, tag = 'input window, operand 6, single buffered']
    #allocation8 [shape = 'u8[8192]{0}', space=vmem, size = 0x2000, scoped, tag = 'input window, operand 7, single buffered']
    #allocation9 [shape = 's32[1]{0}', space=sflag, size = 0x4, scoped, tag = 'scoped memory for tpu_custom_call.1']
    #allocation10 [shape = 'u8[1024]{0}', space=vmem, size = 0x400, scoped, tag = 'output window, operand 0, single buffered']
    %13 = vsyncpa [#allocation3], 0
    %14 = vsyncpa [#allocation6], 0
    %15 = vsyncpa [#allocation9], 0
    %16 = vsyncpa [#allocation4], 0
    // Predicated region
    $region2: #{tpu_custom_call.1} parent=1 // pred_check
      _
    $region3: #{tpu_custom_call.1} parent=1 // pred_check_branch
      %18 = sbr.rel (0) target = $region5
    $region4: #{tpu_custom_call.1} parent=1 // pred_region
      _
    $region5: #{tpu_custom_call.1} parent=1 // pred_fallthru
      _
    // Predicated region
    $region6: #{tpu_custom_call.1} parent=1 // pred_check
      _
    $region7: #{tpu_custom_call.1} parent=1 // pred_check_branch
      %20 = sbr.rel (0) target = $region9
    $region8: #{tpu_custom_call.1} parent=1 // pred_region
      _
    $region9: #{tpu_custom_call.1} parent=1 // pred_fallthru
      _
    // Predicated region
    $region10: #{tpu_custom_call.1} parent=1 // pred_check
      _
    $region11: #{tpu_custom_call.1} parent=1 // pred_check_branch
      %22 = sbr.rel (0) target = $region13
    $region12: #{tpu_custom_call.1} parent=1 // pred_region
      %24 = vsyncadd [#allocation3], 0
      %s25 = sshll.u32 %s2, 4
      %s26 = int_to_ptr.hbm [resolvable:$true] %s25
      %s27 = sshll.u32 [#allocation2], 4
      %s28 = int_to_ptr.vmem [resolvable:$true] %s27
      %33 = dma.hbm_to_vmem [thread:$0]  %s26, 256, %s28, [#allocation3], 64, 64, 4
    $region13: #{tpu_custom_call.1} parent=1 // pred_fallthru
      _
    // Predicated region
    $region14: #{tpu_custom_call.1} parent=1 // pred_check
      _
    $region15: #{tpu_custom_call.1} parent=1 // pred_check_branch
      %35 = sbr.rel (0) target = $region17
    $region16: #{tpu_custom_call.1} parent=1 // pred_region
      _
    $region17: #{tpu_custom_call.1} parent=1 // pred_fallthru
      _
    // Predicated region
    $region18: #{tpu_custom_call.1} parent=1 // pred_check
      _
    $region19: #{tpu_custom_call.1} parent=1 // pred_check_branch
      %37 = sbr.rel (0) target = $region21
    $region20: #{tpu_custom_call.1} parent=1 // pred_region
      %39 = vsyncadd [#allocation6], 0
      %s40 = sshll.u32 %s4, 4
      %s41 = int_to_ptr.hbm [resolvable:$true] %s40
      %s42 = sshll.u32 [#allocation5], 4
      %s43 = int_to_ptr.vmem [resolvable:$true] %s42
      %48 = dma.hbm_to_vmem [thread:$0]  %s41, 512, %s43, [#allocation6], 64, 64, 4
    $region21: #{tpu_custom_call.1} parent=1 // pred_fallthru
      _
    // Predicated region
    $region22: #{tpu_custom_call.1} parent=1 // pred_check
      _
    $region23: #{tpu_custom_call.1} parent=1 // pred_check_branch
      %50 = sbr.rel (0) target = $region25
    $region24: #{tpu_custom_call.1} parent=1 // pred_region
      _
    $region25: #{tpu_custom_call.1} parent=1 // pred_fallthru
      _
    // Predicated region
    $region26: #{tpu_custom_call.1} parent=1 // pred_check
      _
    $region27: #{tpu_custom_call.1} parent=1 // pred_check_branch
      %52 = sbr.rel (0) target = $region29
    $region28: #{tpu_custom_call.1} parent=1 // pred_region
      %54 = vsyncadd [#allocation6], 0
      %s55 = sshll.u32 %s6, 4
      %s56 = int_to_ptr.hbm [resolvable:$true] %s55
      %s57 = sshll.u32 [#allocation7], 4
      %s58 = int_to_ptr.vmem [resolvable:$true] %s57
      %63 = dma.hbm_to_vmem [thread:$0]  %s56, 512, %s58, [#allocation6], 64, 64, 4
    $region29: #{tpu_custom_call.1} parent=1 // pred_fallthru
      _
    // Predicated region
    $region30: #{tpu_custom_call.1} parent=1 // pred_check
      _
    $region31: #{tpu_custom_call.1} parent=1 // pred_check_branch
      %65 = sbr.rel (0) target = $region33
    $region32: #{tpu_custom_call.1} parent=1 // pred_region
      %67 = vsyncadd [#allocation9], 0
      %s68 = sshll.u32 %s7, 4
      %s69 = int_to_ptr.hbm [resolvable:$true] %s68
      %s70 = sshll.u32 [#allocation8], 4
      %s71 = int_to_ptr.vmem [resolvable:$true] %s70
      %76 = dma.hbm_to_vmem [thread:$0]  %s69, 256, %s71, [#allocation9], 64, 64, 4
    $region33: #{tpu_custom_call.1} parent=1 // pred_fallthru
      _
    // Predicated region
    $region34: #{tpu_custom_call.1} parent=1 // pred_check
      _
    $region35: #{tpu_custom_call.1} parent=1 // pred_check_branch
      %78 = sbr.rel (0) target = $region37
    $region36: #{tpu_custom_call.1} parent=1 // pred_region
      %80 = dma.done [#allocation3], 256
    $region37: #{tpu_custom_call.1} parent=1 // pred_fallthru
      _
    // Predicated region
    $region38: #{tpu_custom_call.1} parent=1 // pred_check
      _
    $region39: #{tpu_custom_call.1} parent=1 // pred_check_branch
      %82 = sbr.rel (0) target = $region41
    $region40: #{tpu_custom_call.1} parent=1 // pred_region
      %84 = dma.done [#allocation6], 512
    $region41: #{tpu_custom_call.1} parent=1 // pred_fallthru
      _
    // Predicated region
    $region42: #{tpu_custom_call.1} parent=1 // pred_check
      _
    $region43: #{tpu_custom_call.1} parent=1 // pred_check_branch
      %86 = sbr.rel (0) target = $region45
    $region44: #{tpu_custom_call.1} parent=1 // pred_region
      %88 = dma.done [#allocation6], 512
    $region45: #{tpu_custom_call.1} parent=1 // pred_fallthru
      _
    // Predicated region
    $region46: #{tpu_custom_call.1} parent=1 // pred_check
      _
    $region47: #{tpu_custom_call.1} parent=1 // pred_check_branch
      %90 = sbr.rel (0) target = $region49
    $region48: #{tpu_custom_call.1} parent=1 // pred_region
      %92 = dma.done [#allocation9], 256
    $region49: #{tpu_custom_call.1} parent=1 // pred_fallthru
      _
    %v94 = vld [vmem:[%s0] sm:$0x1]
    %v95 = vld [vmem:[#allocation2] sm:$0xf]
    %v96 = vld [vmem:[#allocation2 + $0x4] sm:$0xf]
    %v97 = vld [vmem:[#allocation2 + $0x8] sm:$0xf]
    %v98 = vld [vmem:[#allocation2 + $0xc] sm:$0xf]
    %v99 = vld [vmem:[%s1] sm:$0x1]
    %v100 = vperm.slane %v99, 0
    %v105 = vunpack.c.l.b16 %v95
    %v106 = vunpack.c.l.b16 %v96
    %v107 = vunpack.c.l.b16 %v97
    %v108 = vunpack.c.l.b16 %v98
    %v109 = vpack.c.b16 %v106, %v105
    %v110 = vpack.c.b16 %v108, %v107
    %vm113 = vcmask 261120
    %v115 = vsel %vm113, %v94, 0
    %117 = vmatpush.bf16.msra.mxu0 0
    %118 = vmatpush.bf16.msra.mxu0 0
    %119 = vmatpush.bf16.msra.mxu0 0
    %120 = vmatpush.bf16.msra.mxu0 0
    %121 = vmatpush.bf16.msra.mxu0 0
    %122 = vmatpush.bf16.msra.mxu0 0
    %123 = vmatpush.bf16.msra.mxu0 %v110
    %124 = vmatpush.bf16.msra.mxu0 %v109
    %125 = vmatmul.bf16.gmra.mxu0 %v115
    %v126 = vpop.f32.mrf.mxu0
    %v127 = vadd.f32 %v100, %v126
    %v128 = vpop.f32.mrf.mxu0
    %129 = vdwg.mxu0
    %v130 = vxor.u32 %v127, 2147483648
    %v131 = vmul.f32 %v130, 1.442695
    %v132 = vpow.pop %v131
    %v133 = vadd.f32 %v132, 1.0
    %v134 = vrcp.pop %v133
    %v135 = vmul.f32 %v133, %v134
    %v136 = vsub.f32 1.0, %v135
    %v137 = vmul.f32 %v134, %v136
    %v138 = vadd.f32 %v134, %v137
    %vm139 = vweird.f32 %v133
    %vm140 = vweird.f32 %v134
    %vm141 = vmor %vm139, %vm140
    %v142 = vsel %vm141, %v134, %v138
    %v143 = vand.u32 2147483647, %v133
    %vm144 = vcmp.eq.f32.partialorder %v143, 8.507059e+37
    %v145 = vand.u32 %v133, 2147483648
    %v146 = vor.u32 1.1754944e-38, %v145
    %v147 = vsel %vm144, %v146, %v142
    %v148 = vmul.f32 1.0, %v147
    %v149 = vmul.f32 %v127, %v148
    %v150 = vpack.c.bf16 %v149, %v149
    %v151 = vld [vmem:[%s5] sm:$0xf]
    %v152 = vld [vmem:[%s5 + $0x4] sm:$0xf]
    %v153 = vld [vmem:[%s5 + $0x8] sm:$0xf]
    %v154 = vld [vmem:[%s5 + $0xc] sm:$0xf]
    %v155 = vld [vmem:[%s5 + $0x10] sm:$0xf]
    %v156 = vld [vmem:[%s5 + $0x14] sm:$0xf]
    %v157 = vld [vmem:[%s5 + $0x18] sm:$0xf]
    %v158 = vld [vmem:[%s5 + $0x1c] sm:$0xf]
    %v159 = vld [vmem:[%s1 + $0x7] sm:$0x1]
    %v160 = vperm.slane %v159, 0
    %v169 = vunpack.c.l.b16 %v151
    %v170 = vunpack.c.l.b16 %v152
    %v171 = vunpack.c.l.b16 %v153
    %v172 = vunpack.c.l.b16 %v154
    %v173 = vunpack.c.l.b16 %v155
    %v174 = vunpack.c.l.b16 %v156
    %v175 = vunpack.c.l.b16 %v157
    %v176 = vunpack.c.l.b16 %v158
    %v177 = vpack.c.b16 %v170, %v169
    %v178 = vpack.c.b16 %v172, %v171
    %v179 = vpack.c.b16 %v174, %v173
    %v180 = vpack.c.b16 %v176, %v175
    %vm185 = vcmask 523264
    %v187 = vsel %vm185, %v150, 0
    %189 = vmatpush.bf16.msra.mxu0 0
    %190 = vmatpush.bf16.msra.mxu0 0
    %191 = vmatpush.bf16.msra.mxu0 0
    %192 = vmatpush.bf16.msra.mxu0 0
    %193 = vmatpush.bf16.msra.mxu0 %v180
    %194 = vmatpush.bf16.msra.mxu0 %v179
    %195 = vmatpush.bf16.msra.mxu0 %v178
    %196 = vmatpush.bf16.msra.mxu0 %v177
    %197 = vmatmul.bf16.gmra.mxu0 %v187
    %v198 = vpop.f32.mrf.mxu0
    %v199 = vadd.f32 %v160, %v198
    %v200 = vpop.f32.mrf.mxu0
    %201 = vdwg.mxu0
    %v202 = vld [vmem:[%s1 + $0x8] sm:$0x1]
    %v203 = vld [vmem:[%s1 + $0x9] sm:$0x1]
    %vm204 = vcmask 254976
    %v205 = vsel %vm204, %v199, 0.0
    %206 = vadd.xlane.f32.xlu0 %v205
    %v207 = vpop.xlane.xlu0 %206
    %v208 = vrcp.pop 32.0
    %v209 = vmul.f32 32.0, %v208
    %v210 = vsub.f32 1.0, %v209
    %v211 = vmul.f32 %v208, %v210
    %v212 = vadd.f32 %v208, %v211
    %vm213 = vweird.f32 %v208
    %v214 = vsel %vm213, %v208, %v212
    %v215 = vmul.f32 %v207, %v214
    %v216 = vsub.f32 %v199, %v215
    %v217 = vmul.f32 %v216, %v216
    %v218 = vsel %vm204, %v217, 0.0
    %219 = vadd.xlane.f32.xlu0 %v218
    %v220 = vpop.xlane.xlu0 %219
    %v221 = vmul.f32 %v220, %v214
    %v222 = vadd.f32 %v221, 1e-05
    %v223 = vrsqrt.pop %v222
    %v224 = vmul.f32 %v223, %v222
    %v225 = vmul.f32 %v224, %v223
    %v226 = vmul.f32 0.5, %v225
    %v227 = vsub.f32 1.5, %v226
    %v228 = vmul.f32 %v223, %v227
    %vm229 = vweird.f32 %v222
    %vm230 = vweird.f32 %v223
    %vm231 = vmor %vm229, %vm230
    %v232 = vsel %vm231, %v223, %v228
    %v233 = vmul.f32 %v216, %v232
    %v234 = vperm.slane %v202, 0
    %v235 = vmul.f32 %v233, %v234
    %v236 = vperm.slane %v203, 0
    %v237 = vadd.f32 %v235, %v236
    %v238 = vxor.u32 %v237, 2147483648
    %v239 = vmul.f32 %v238, 1.442695
    %v240 = vpow.pop %v239
    %v241 = vadd.f32 %v240, 1.0
    %v242 = vrcp.pop %v241
    %v243 = vmul.f32 %v241, %v242
    %v244 = vsub.f32 1.0, %v243
    %v245 = vmul.f32 %v242, %v244
    %v246 = vadd.f32 %v242, %v245
    %vm247 = vweird.f32 %v241
    %vm248 = vweird.f32 %v242
    %vm249 = vmor %vm247, %vm248
    %v250 = vsel %vm249, %v242, %v246
    %v251 = vand.u32 2147483647, %v241
    %vm252 = vcmp.eq.f32.partialorder %v251, 8.507059e+37
    %v253 = vand.u32 %v241, 2147483648
    %v254 = vor.u32 1.1754944e-38, %v253
    %v255 = vsel %vm252, %v254, %v250
    %v256 = vmul.f32 1.0, %v255
    %v257 = vmul.f32 %v237, %v256
    %v258 = vpack.c.bf16 %v257, %v257
    %v259 = vld [vmem:[#allocation8] sm:$0xf]
    %v260 = vld [vmem:[#allocation8 + $0x4] sm:$0xf]
    %v261 = vld [vmem:[#allocation8 + $0x8] sm:$0xf]
    %v262 = vld [vmem:[#allocation8 + $0xc] sm:$0xf]
    %v263 = vld [vmem:[%s1 + $0xa] sm:$0x1]
    %v264 = vperm.slane %v263, 0
    %v269 = vunpack.c.l.b16 %v259
    %v270 = vunpack.c.l.b16 %v260
    %v271 = vunpack.c.l.b16 %v261
    %v272 = vunpack.c.l.b16 %v262
    %v273 = vpack.c.b16 %v270, %v269
    %v274 = vpack.c.b16 %v272, %v271
    %v278 = vsel %vm113, %v258, 0
    %280 = vmatpush.bf16.msra.mxu0 0
    %281 = vmatpush.bf16.msra.mxu0 0
    %282 = vmatpush.bf16.msra.mxu0 0
    %283 = vmatpush.bf16.msra.mxu0 0
    %284 = vmatpush.bf16.msra.mxu0 0
    %285 = vmatpush.bf16.msra.mxu0 0
    %286 = vmatpush.bf16.msra.mxu0 %v274
    %287 = vmatpush.bf16.msra.mxu0 %v273
    %288 = vmatmul.bf16.gmra.mxu0 %v278
    %v289 = vpop.f32.mrf.mxu0
    %v290 = vadd.f32 %v264, %v289
    %v291 = vpop.f32.mrf.mxu0
    %292 = vdwg.mxu0
    %v293 = vld [vmem:[%s3] sm:$0xf]
    %v294 = vld [vmem:[%s3 + $0x4] sm:$0xf]
    %v295 = vld [vmem:[%s3 + $0x8] sm:$0xf]
    %v296 = vld [vmem:[%s3 + $0xc] sm:$0xf]
    %v297 = vld [vmem:[%s3 + $0x10] sm:$0xf]
    %v298 = vld [vmem:[%s3 + $0x14] sm:$0xf]
    %v299 = vld [vmem:[%s3 + $0x18] sm:$0xf]
    %v300 = vld [vmem:[%s3 + $0x1c] sm:$0xf]
    %v301 = vld [vmem:[%s1 + $0x1] sm:$0x1]
    %v302 = vperm.slane %v301, 0
    %v311 = vunpack.c.l.b16 %v293
    %v312 = vunpack.c.l.b16 %v294
    %v313 = vunpack.c.l.b16 %v295
    %v314 = vunpack.c.l.b16 %v296
    %v315 = vunpack.c.l.b16 %v297
    %v316 = vunpack.c.l.b16 %v298
    %v317 = vunpack.c.l.b16 %v299
    %v318 = vunpack.c.l.b16 %v300
    %v319 = vpack.c.b16 %v312, %v311
    %v320 = vpack.c.b16 %v314, %v313
    %v321 = vpack.c.b16 %v316, %v315
    %v322 = vpack.c.b16 %v318, %v317
    %327 = vmatpush.bf16.msra.mxu0 0
    %328 = vmatpush.bf16.msra.mxu0 0
    %329 = vmatpush.bf16.msra.mxu0 0
    %330 = vmatpush.bf16.msra.mxu0 0
    %331 = vmatpush.bf16.msra.mxu0 %v322
    %332 = vmatpush.bf16.msra.mxu0 %v321
    %333 = vmatpush.bf16.msra.mxu0 %v320
    %334 = vmatpush.bf16.msra.mxu0 %v319
    %335 = vmatmul.bf16.gmra.mxu0 %v187
    %v336 = vpop.f32.mrf.mxu0
    %v337 = vadd.f32 %v302, %v336
    %v338 = vpop.f32.mrf.mxu0
    %339 = vdwg.mxu0
    %v340 = vld [vmem:[%s1 + $0x2] sm:$0x1]
    %v341 = vld [vmem:[%s1 + $0x3] sm:$0x1]
    %v342 = vlaneseq
    %v343 = vand.u32 %v342, 127
    %vm344 = vcmp.lt.s32.totalorder %v343, 32
    %v345 = vsel %vm344, %v337, 0.0
    %vm346 = vcmask 517120
    %v347 = vsel %vm346, %v345, 0.0
    %348 = vadd.xlane.f32.xlu0 %v347
    %v349 = vpop.xlane.xlu0 %348
    %v350 = vmul.f32 %v349, 0.03125
    %v351 = vsel %vm344, 0.0, %v337
    %v352 = vsel %vm346, %v351, 0.0
    %353 = vadd.xlane.f32.xlu0 %v352
    %v354 = vpop.xlane.xlu0 %353
    %v355 = vmul.f32 %v354, 0.03125
    %v356 = vsel %vm344, %v350, %v355
    %v357 = vsub.f32 %v337, %v356
    %v358 = vmul.f32 %v357, %v357
    %v359 = vsel %vm344, %v358, 0.0
    %v360 = vsel %vm346, %v359, 0.0
    %361 = vadd.xlane.f32.xlu0 %v360
    %v362 = vpop.xlane.xlu0 %361
    %v363 = vmul.f32 %v362, 0.03125
    %v364 = vsel %vm344, 0.0, %v358
    %v365 = vsel %vm346, %v364, 0.0
    %366 = vadd.xlane.f32.xlu0 %v365
    %v367 = vpop.xlane.xlu0 %366
    %v368 = vmul.f32 %v367, 0.03125
    %v369 = vsel %vm344, %v363, %v368
    %v370 = vadd.f32 %v369, 1e-05
    %v371 = vrsqrt.pop %v370
    %v372 = vmul.f32 %v371, %v370
    %v373 = vmul.f32 %v372, %v371
    %v374 = vmul.f32 0.5, %v373
    %v375 = vsub.f32 1.5, %v374
    %v376 = vmul.f32 %v371, %v375
    %vm377 = vweird.f32 %v370
    %vm378 = vweird.f32 %v371
    %vm379 = vmor %vm377, %vm378
    %v380 = vsel %vm379, %v371, %v376
    %v381 = vmul.f32 %v357, %v380
    %v382 = vperm.slane %v340, 0
    %v383 = vmul.f32 %v381, %v382
    %v384 = vperm.slane %v341, 0
    %v385 = vadd.f32 %v383, %v384
    %v386 = vxor.u32 %v385, 2147483648
    %v387 = vmul.f32 %v386, 1.442695
    %v388 = vpow.pop %v387
    %v389 = vadd.f32 %v388, 1.0
    %v390 = vrcp.pop %v389
    %v391 = vmul.f32 %v389, %v390
    %v392 = vsub.f32 1.0, %v391
    %v393 = vmul.f32 %v390, %v392
    %v394 = vadd.f32 %v390, %v393
    %vm395 = vweird.f32 %v389
    %vm396 = vweird.f32 %v390
    %vm397 = vmor %vm395, %vm396
    %v398 = vsel %vm397, %v390, %v394
    %v399 = vand.u32 2147483647, %v389
    %vm400 = vcmp.eq.f32.partialorder %v399, 8.507059e+37
    %v401 = vand.u32 %v389, 2147483648
    %v402 = vor.u32 1.1754944e-38, %v401
    %v403 = vsel %vm400, %v402, %v398
    %v404 = vmul.f32 1.0, %v403
    %v405 = vmul.f32 %v385, %v404
    %v406 = vpack.c.bf16 %v405, %v405
    %v407 = vld [vmem:[#allocation5] sm:$0xf]
    %v408 = vld [vmem:[#allocation5 + $0x4] sm:$0xf]
    %v409 = vld [vmem:[#allocation5 + $0x8] sm:$0xf]
    %v410 = vld [vmem:[#allocation5 + $0xc] sm:$0xf]
    %v411 = vld [vmem:[#allocation5 + $0x10] sm:$0xf]
    %v412 = vld [vmem:[#allocation5 + $0x14] sm:$0xf]
    %v413 = vld [vmem:[#allocation5 + $0x18] sm:$0xf]
    %v414 = vld [vmem:[#allocation5 + $0x1c] sm:$0xf]
    %v415 = vld [vmem:[%s1 + $0x4] sm:$0x1]
    %v416 = vperm.slane %v415, 0
    %v425 = vunpack.c.l.b16 %v407
    %v426 = vunpack.c.l.b16 %v408
    %v427 = vunpack.c.l.b16 %v409
    %v428 = vunpack.c.l.b16 %v410
    %v429 = vunpack.c.l.b16 %v411
    %v430 = vunpack.c.l.b16 %v412
    %v431 = vunpack.c.l.b16 %v413
    %v432 = vunpack.c.l.b16 %v414
    %v433 = vpack.c.b16 %v426, %v425
    %v434 = vpack.c.b16 %v428, %v427
    %v435 = vpack.c.b16 %v430, %v429
    %v436 = vpack.c.b16 %v432, %v431
    %v442 = vsel %vm185, %v406, 0
    %444 = vmatpush.bf16.msra.mxu0 0
    %445 = vmatpush.bf16.msra.mxu0 0
    %446 = vmatpush.bf16.msra.mxu0 0
    %447 = vmatpush.bf16.msra.mxu0 0
    %448 = vmatpush.bf16.msra.mxu0 %v436
    %449 = vmatpush.bf16.msra.mxu0 %v435
    %450 = vmatpush.bf16.msra.mxu0 %v434
    %451 = vmatpush.bf16.msra.mxu0 %v433
    %452 = vmatmul.bf16.gmra.mxu0 %v442
    %v453 = vpop.f32.mrf.mxu0
    %v454 = vadd.f32 %v416, %v453
    %v455 = vpop.f32.mrf.mxu0
    %456 = vdwg.mxu0
    %v457 = vld [vmem:[%s1 + $0x5] sm:$0x1]
    %v458 = vld [vmem:[%s1 + $0x6] sm:$0x1]
    %v459 = vsel %vm344, %v454, 0.0
    %v460 = vsel %vm346, %v459, 0.0
    %461 = vadd.xlane.f32.xlu0 %v460
    %v462 = vpop.xlane.xlu0 %461
    %v463 = vmul.f32 %v462, 0.03125
    %v464 = vsel %vm344, 0.0, %v454
    %v465 = vsel %vm346, %v464, 0.0
    %466 = vadd.xlane.f32.xlu0 %v465
    %v467 = vpop.xlane.xlu0 %466
    %v468 = vmul.f32 %v467, 0.03125
    %v469 = vsel %vm344, %v463, %v468
    %v470 = vsub.f32 %v454, %v469
    %v471 = vmul.f32 %v470, %v470
    %v472 = vsel %vm344, %v471, 0.0
    %v473 = vsel %vm346, %v472, 0.0
    %474 = vadd.xlane.f32.xlu0 %v473
    %v475 = vpop.xlane.xlu0 %474
    %v476 = vmul.f32 %v475, 0.03125
    %v477 = vsel %vm344, 0.0, %v471
    %v478 = vsel %vm346, %v477, 0.0
    %479 = vadd.xlane.f32.xlu0 %v478
    %v480 = vpop.xlane.xlu0 %479
    %v481 = vmul.f32 %v480, 0.03125
    %v482 = vsel %vm344, %v476, %v481
    %v483 = vadd.f32 %v482, 1e-05
    %v484 = vrsqrt.pop %v483
    %v485 = vmul.f32 %v484, %v483
    %v486 = vmul.f32 %v485, %v484
    %v487 = vmul.f32 0.5, %v486
    %v488 = vsub.f32 1.5, %v487
    %v489 = vmul.f32 %v484, %v488
    %vm490 = vweird.f32 %v483
    %vm491 = vweird.f32 %v484
    %vm492 = vmor %vm490, %vm491
    %v493 = vsel %vm492, %v484, %v489
    %v494 = vmul.f32 %v470, %v493
    %v495 = vperm.slane %v457, 0
    %v496 = vmul.f32 %v494, %v495
    %v497 = vperm.slane %v458, 0
    %v498 = vadd.f32 %v496, %v497
    %v499 = vxor.u32 %v498, 2147483648
    %v500 = vmul.f32 %v499, 1.442695
    %v501 = vpow.pop %v500
    %v502 = vadd.f32 %v501, 1.0
    %v503 = vrcp.pop %v502
    %v504 = vmul.f32 %v502, %v503
    %v505 = vsub.f32 1.0, %v504
    %v506 = vmul.f32 %v503, %v505
    %v507 = vadd.f32 %v503, %v506
    %vm508 = vweird.f32 %v502
    %vm509 = vweird.f32 %v503
    %vm510 = vmor %vm508, %vm509
    %v511 = vsel %vm510, %v503, %v507
    %v512 = vand.u32 2147483647, %v502
    %vm513 = vcmp.eq.f32.partialorder %v512, 8.507059e+37
    %v514 = vand.u32 %v502, 2147483648
    %v515 = vor.u32 1.1754944e-38, %v514
    %v516 = vsel %vm513, %v515, %v511
    %v517 = vmul.f32 1.0, %v516
    %v518 = vmul.f32 %v498, %v517
    %v519 = vpack.c.bf16 %v518, %v518
    %v520 = vld [vmem:[#allocation7] sm:$0xf]
    %v521 = vld [vmem:[#allocation7 + $0x4] sm:$0xf]
    %v522 = vld [vmem:[#allocation7 + $0x8] sm:$0xf]
    %v523 = vld [vmem:[#allocation7 + $0xc] sm:$0xf]
    %v524 = vld [vmem:[#allocation7 + $0x10] sm:$0xf]
    %v525 = vld [vmem:[#allocation7 + $0x14] sm:$0xf]
    %v526 = vld [vmem:[#allocation7 + $0x18] sm:$0xf]
    %v527 = vld [vmem:[#allocation7 + $0x1c] sm:$0xf]
    %v536 = vunpack.c.l.b16 %v520
    %v537 = vunpack.c.l.b16 %v521
    %v538 = vunpack.c.l.b16 %v522
    %v539 = vunpack.c.l.b16 %v523
    %v540 = vunpack.c.l.b16 %v524
    %v541 = vunpack.c.l.b16 %v525
    %v542 = vunpack.c.l.b16 %v526
    %v543 = vunpack.c.l.b16 %v527
    %v544 = vpack.c.b16 %v537, %v536
    %v545 = vpack.c.b16 %v539, %v538
    %v546 = vpack.c.b16 %v541, %v540
    %v547 = vpack.c.b16 %v543, %v542
    %v553 = vsel %vm185, %v519, 0
    %555 = vmatpush.bf16.msra.mxu0 0
    %556 = vmatpush.bf16.msra.mxu0 0
    %557 = vmatpush.bf16.msra.mxu0 0
    %558 = vmatpush.bf16.msra.mxu0 0
    %559 = vmatpush.bf16.msra.mxu0 %v547
    %560 = vmatpush.bf16.msra.mxu0 %v546
    %561 = vmatpush.bf16.msra.mxu0 %v545
    %562 = vmatpush.bf16.msra.mxu0 %v544
    %563 = vmatmul.bf16.gmra.mxu0 %v553
    %v564 = vpop.f32.mrf.mxu0
    %v565 = vadd.f32 0.0, %v564
    %v566 = vpop.f32.mrf.mxu0
    %567 = vdwg.mxu0
    %v568 = vadd.f32 %v290, %v565
    %569 = vst [vmem:[#allocation10] sm:$0x3] %v568
    // Predicated region
    $region50: #{tpu_custom_call.1} parent=1 // pred_check
      _
    $region51: #{tpu_custom_call.1} parent=1 // pred_check_branch
      %571 = sbr.rel (0) target = $region53
    $region52: #{tpu_custom_call.1} parent=1 // pred_region
      %573 = vsyncadd [#allocation4], 0
      %s575 = sshll.u32 [#allocation10], 4
      %s576 = int_to_ptr.vmem [resolvable:$true] %s575
      %s577 = sshll.u32 %s8, 4
      %s578 = int_to_ptr.hbm [resolvable:$true] %s577
      %580 = dma.vmem_to_hbm [thread:$0]  %s576, 32, %s578, [#allocation4]
    $region53: #{tpu_custom_call.1} parent=1 // pred_fallthru
      _
    // Predicated region
    $region54: #{tpu_custom_call.1} parent=1 // pred_check
      _
    $region55: #{tpu_custom_call.1} parent=1 // pred_check_branch
      %582 = sbr.rel (0) target = $region57
    $region56: #{tpu_custom_call.1} parent=1 // pred_region
      %584 = dma.done [#allocation4], 32
    $region57: #{tpu_custom_call.1} parent=1 // pred_fallthru
      _
    %585 = vsyncpa [#allocation3], 1
    %586 = vsyncpa [#allocation6], 1
    %587 = vsyncpa [#allocation9], 1
    %588 = vsyncpa [#allocation4], 1

</llo_original>
